<compile_context>
chip_gen: v7x
topology: tpu7x:2x2x1
jax: 0.10.0
libtpu: 0.0.40
codegen_flags: <defaults>
</compile_context>

<pallas_src>
import numpy as np
import jax
import jax.numpy as jnp
from jax.experimental import pallas as pl
from jax.experimental.pallas import tpu as pltpu


def _round_up(x, m):
    return ((x + m - 1) // m) * m


def _round_down(x, m):
    return (x // m) * m


def _vmem_budget_bytes():
    """~85% of per-core VMEM capacity (headroom for Mosaic internal scratch).
    v5e/v6e: ~108 MiB of 128 MiB; v7x: ~54 MiB of 64 MiB."""
    try:
        cap = int(pltpu.get_tpu_info().vmem_capacity_bytes)
    except Exception:
        cap = 64 * 1024 * 1024          # conservative default (v7x-sized)
    return max(int(cap * 0.85), 32 * 1024 * 1024)


# ----------------------------------------------------------------------------
# Kernels
# ----------------------------------------------------------------------------
def rff_fused_kernel(x_ref, w1_ref, b1_ref, w2_ref, b2_ref, o_ref):
    # Stage 1: fused [omega | rand_omega] matmul, bias add, cos (f32 phase).
    feat = jnp.cos(
        jnp.dot(x_ref[...], w1_ref[...], preferred_element_type=jnp.float32)
        + b1_ref[...])                                           # (TB, F_pad)
    # Stage 2: fc over the (implicit) concatenation.  If w2 is bf16 the MXU
    # runs bf16 with f32 accumulation; otherwise pure f32.
    out = (jnp.dot(feat.astype(w2_ref.dtype), w2_ref[...],
                   preferred_element_type=jnp.float32)
           + b2_ref[...])                                        # (TB, n_out_pad)
    o_ref[...] = out.astype(o_ref.dtype)


def rff_tiled_kernel(x_ref, w1_ref, b1_ref, w2_ref, b2_ref, o_ref, feat_ref):
    # Large-n_out path: feat computed once per batch tile (j == 0) into VMEM
    # scratch, reused for every n_out column tile j.
    @pl.when(pl.program_id(1) == 0)
    def _():
        feat_ref[...] = jnp.cos(
            jnp.dot(x_ref[...], w1_ref[...], preferred_element_type=jnp.float32)
            + b1_ref[...]).astype(feat_ref.dtype)

    out = (jnp.dot(feat_ref[...], w2_ref[...],
                   preferred_element_type=jnp.float32)
           + b2_ref[...])
    o_ref[...] = out.astype(o_ref.dtype)


# ----------------------------------------------------------------------------
# Tiling heuristics
# ----------------------------------------------------------------------------
def _pick_block_b(B, n_in, F_pad, n_out_pad, w2_itemsize, budget_bytes):
    """Largest batch tile whose VMEM working set (single-buffered resident
    weights + double-buffered x/out tiles + f32 temporaries) fits `budget`.
    Returns None when the resident weights alone do not fit (-> tiled path)."""
    weight_bytes = (4 * (n_in * F_pad + F_pad)            # W1 + b1 (f32), 1 copy
                    + w2_itemsize * F_pad * n_out_pad     # W2, 1 copy
                    + 4 * n_out_pad)                      # b2 (f32), 1 copy
    per_row = (4 * 2 * n_in                               # x tile, double-buffered
               + 4 * 2 * n_out_pad                        # out tile, double-buffered
               + 4 * F_pad                                # feat f32 temporary
               + 4 * n_out_pad)                           # pre-store f32 temporary
    avail = budget_bytes - weight_bytes
    if avail < 8 * per_row:
        return None
    tb = min(int(avail // per_row), 4096)
    tb = _round_down(tb, 256) if tb >= 256 else _round_down(tb, 8)
    b8 = _round_up(B, 8)
    # Guarantee >= 2 balanced grid steps for large batches so v7x megacore can
    # shard the batch axis across both TensorCores (no-op on v5e/v6e).
    if b8 >= 512:
        tb = min(tb, _round_up(-(-b8 // 2), 8))
    tb = min(tb, b8)
    return max(_round_down(tb, 8), 8)


# ----------------------------------------------------------------------------
# pallas_call wrappers
# ----------------------------------------------------------------------------
def _rff_fused_call(x, w1, b1, w2, b2, B, n_in, F_pad, n_out_pad, TB, budget):
    f32 = jnp.float32
    B_pad = _round_up(B, TB)
    if B_pad != B:
        x = jnp.pad(x, ((0, B_pad - B), (0, 0)))
    grid = (B_pad // TB,)

    # Whole-array VMEM operands: copied in once, single-buffered, resident.
    resident = pl.BlockSpec(memory_space=pltpu.MemorySpace.VMEM)

    cost = pl.CostEstimate(
        flops=2 * B_pad * F_pad * (n_in + n_out_pad),
        transcendentals=B_pad * F_pad,
        bytes_accessed=(4 * (B_pad * n_in + B_pad * n_out_pad
                             + n_in * F_pad + F_pad + n_out_pad)
                        + w2.dtype.itemsize * F_pad * n_out_pad),
    )

    out_padded = pl.pallas_call(
        rff_fused_kernel,
        out_shape=jax.ShapeDtypeStruct((B_pad, n_out_pad), f32),
        grid=grid,
        in_specs=[
            pl.BlockSpec((TB, n_in), lambda i: (i, 0)),     # x tile (double-buffered)
            resident,                                       # W1
            resident,                                       # b1
            resident,                                       # W2
            resident,                                       # b2
        ],
        out_specs=pl.BlockSpec((TB, n_out_pad), lambda i: (i, 0)),
        compiler_params=pltpu.CompilerParams(
            dimension_semantics=("parallel",),
            vmem_limit_bytes=int(budget),
        ),
        cost_estimate=cost,
    )(x, w1, b1, w2, b2)
    return out_padded, B_pad


def _rff_tiled_call(x, w1, b1, w2, b2, B, n_in, F_pad, n_out_pad, budget):
    # Fallback when resident W2 does not fit VMEM: tile W2 / out along the
    # n_out axis, keep W1/b1 resident, hold `feat` in a VMEM scratch.
    # TODO(synk): if n_in * F_pad itself outgrows VMEM, W1 would also need
    # K-tiling with a feat accumulator; not needed for realistic RFF sizes.
    f32 = jnp.float32
    w2_itemsize = w2.dtype.itemsize
    TN = min(n_out_pad, 512)

    fixed = (4 * (n_in * F_pad + F_pad)                     # W1 + b1 resident
             + w2_itemsize * 2 * F_pad * TN + 4 * 2 * TN)   # W2/b2 tiles, dbl-buffered
    per_row = (4 * 2 * n_in                                 # x tile, dbl-buffered
               + w2_itemsize * F_pad                        # feat scratch
               + 4 * F_pad                                  # f32 temp during feat
               + 4 * 2 * TN                                 # out tile, dbl-buffered
               + 4 * TN)                                    # pre-store f32 temp
    avail = budget - fixed
    tb = int(avail // per_row) if avail > 0 else 8
    tb = min(max(_round_down(tb, 8), 8), 2048, _round_up(B, 8))

    B_pad = _round_up(B, tb)
    if B_pad != B:
        x = jnp.pad(x, ((0, B_pad - B), (0, 0)))
    grid = (B_pad // tb, n_out_pad // TN)

    resident = pl.BlockSpec(memory_space=pltpu.MemorySpace.VMEM)
    cost = pl.CostEstimate(
        flops=2 * B_pad * F_pad * (n_in + n_out_pad),
        transcendentals=B_pad * F_pad,
        bytes_accessed=(4 * (B_pad * n_in + B_pad * n_out_pad
                             + n_in * F_pad + F_pad + n_out_pad)
                        + w2_itemsize * F_pad * n_out_pad),
    )

    out_padded = pl.pallas_call(
        rff_tiled_kernel,
        out_shape=jax.ShapeDtypeStruct((B_pad, n_out_pad), f32),
        grid=grid,
        in_specs=[
            pl.BlockSpec((tb, n_in), lambda i, j: (i, 0)),       # x tile
            resident,                                            # W1 (resident)
            resident,                                            # b1 (resident)
            pl.BlockSpec((F_pad, TN), lambda i, j: (0, j)),      # W2 column tile
            pl.BlockSpec((1, TN), lambda i, j: (0, j)),          # b2 column tile
        ],
        out_specs=pl.BlockSpec((tb, TN), lambda i, j: (i, j)),
        scratch_shapes=[pltpu.VMEM((tb, F_pad), w2.dtype)],      # feat scratch
        compiler_params=pltpu.CompilerParams(
            dimension_semantics=("parallel", "arbitrary"),
            vmem_limit_bytes=int(budget),
        ),
        cost_estimate=cost,
    )(x, w1, b1, w2, b2)
    return out_padded, B_pad


# ----------------------------------------------------------------------------
# Public entry point
# ----------------------------------------------------------------------------
def rff_layer(x, omega, rand_omega, bias, rand_bias, fc_weight, fc_bias,
              *, stage2_bf16=False):
    """x: (B, n_in) f32.  Params follow the PyTorch shapes:
       omega, rand_omega: (n_in, n_out); bias, rand_bias: (n_out,);
       fc_weight: (n_out, 2*n_out); fc_bias: (n_out,).
       stage2_bf16: run the second (fc) matmul in bf16 with f32 accumulation
       (~2-3x faster when MXU-bound, ~1e-3 relative error)."""
    f32 = jnp.float32
    x = x.astype(f32)
    B, n_in = x.shape
    n_out = omega.shape[1]
    n_out_pad = _round_up(n_out, 128)
    F_pad = _round_up(2 * n_out, 128)        # JOINT padding of the concat width
    w2_dtype = jnp.bfloat16 if stage2_bf16 else f32

    # ---- Lane-padded parameter prep (tiny, one-time) -------------------------
    # Stage-1 weight: cols [0:n_out] = omega, [n_out:2*n_out] = rand_omega,
    # matching cat([x_c, x_rp], -1).  Padded columns stay zero.
    w1 = jnp.zeros((n_in, F_pad), f32)
    w1 = w1.at[:, :n_out].set(omega.astype(f32))
    w1 = w1.at[:, n_out:2 * n_out].set(rand_omega.astype(f32))
    b1 = jnp.zeros((1, F_pad), f32)
    b1 = b1.at[0, :n_out].set(bias.astype(f32))
    b1 = b1.at[0, n_out:2 * n_out].set(rand_bias.astype(f32))

    # Stage-2 weight: feat @ w2 == cat([x_c, x_rp]) @ fc_weight.T.  Rows above
    # 2*n_out are zero so the cos(0)=1 padded feat columns cannot leak.
    w2 = jnp.zeros((F_pad, n_out_pad), f32)
    w2 = w2.at[:2 * n_out, :n_out].set(fc_weight.astype(f32).T)
    w2 = w2.astype(w2_dtype)
    b2 = jnp.zeros((1, n_out_pad), f32).at[0, :n_out].set(fc_bias.astype(f32))

    budget = _vmem_budget_bytes()
    TB = _pick_block_b(B, n_in, F_pad, n_out_pad,
                       jnp.dtype(w2_dtype).itemsize, budget)

    if TB is not None:
        out_padded, B_pad = _rff_fused_call(
            x, w1, b1, w2, b2, B, n_in, F_pad, n_out_pad, TB, budget)
    else:
        out_padded, B_pad = _rff_tiled_call(
            x, w1, b1, w2, b2, B, n_in, F_pad, n_out_pad, budget)

    if B_pad == B and n_out_pad == n_out:
        return out_padded            # skip the un-padding copy when possible
    return out_padded[:B, :n_out]


def rff_reference(x, omega, rand_omega, bias, rand_bias, fc_weight, fc_bias):
    x_rp = jnp.cos(x @ rand_omega + rand_bias)
    x_c = jnp.cos(x @ omega + bias)
    cat = jnp.concatenate([x_c, x_rp], axis=-1)
    return cat @ fc_weight.T + fc_bias


if __name__ == "__main__":
    B, n_in, n_out, rng = 8, 16, 32, 10.0

    key = jax.random.PRNGKey(0)
    k_x, k_ro, k_b, k_rb, k_fw, k_fb = jax.random.split(key, 6)

    # Deterministic parameter init mirroring the PyTorch __init__ shapes.
    omega = jnp.linspace(-rng, rng, n_in * n_out,
                         dtype=jnp.float32).reshape(n_out, n_in).T   # (n_in, n_out)
    rand_omega = jax.random.normal(k_ro, (n_in, n_out), jnp.float32) * rng
    bias = jax.random.uniform(k_b, (n_out,), jnp.float32) * np.pi
    rand_bias = jax.random.uniform(k_rb, (n_out,), jnp.float32) * np.pi
    lim = 1.0 / np.sqrt(2 * n_out)
    fc_weight = jax.random.uniform(k_fw, (n_out, 2 * n_out), jnp.float32,
                                   minval=-lim, maxval=lim)
    fc_bias = jax.random.uniform(k_fb, (n_out,), jnp.float32,
                                 minval=-lim, maxval=lim)

    x = jax.random.normal(k_x, (B, n_in), jnp.float32)

    out = rff_layer(x, omega, rand_omega, bias, rand_bias, fc_weight, fc_bias)
    out = jax.block_until_ready(out)

    ref = rff_reference(x, omega, rand_omega, bias, rand_bias, fc_weight, fc_bias)
    np.testing.assert_allclose(np.asarray(out), np.asarray(ref),
                               rtol=1e-5, atol=1e-5)
    print("KERNEL_OK")
</pallas_src>

<mosaic_0001>
module attributes {stable_mosaic.version = 11 : i64} {
  func.func @rff_fused_kernel(%arg0: i32, %arg1: memref<8x16xf32, #tpu.memory_space<vmem>>, %arg2: memref<16x128xf32, #tpu.memory_space<vmem>>, %arg3: memref<1x128xf32, #tpu.memory_space<vmem>>, %arg4: memref<128x128xf32, #tpu.memory_space<vmem>>, %arg5: memref<1x128xf32, #tpu.memory_space<vmem>>, %arg6: memref<8x128xf32, #tpu.memory_space<vmem>>) attributes {dimension_semantics = [#tpu.dimension_semantics<parallel>], iteration_bounds = array<i64: 1>, scalar_prefetch = 0 : i64, scratch_operands = 0 : i64, tpu.core_type = #tpu.core_type<tc>, window_params = [{transform_indices = @transform_0, window_bounds = array<i64: 8, 16>}, {pipeline_mode = #tpu.pipeline_mode<synchronous>, transform_indices = @transform_1, window_bounds = array<i64: 16, 128>}, {pipeline_mode = #tpu.pipeline_mode<synchronous>, transform_indices = @transform_2, window_bounds = array<i64: 1, 128>}, {pipeline_mode = #tpu.pipeline_mode<synchronous>, transform_indices = @transform_3, window_bounds = array<i64: 128, 128>}, {pipeline_mode = #tpu.pipeline_mode<synchronous>, transform_indices = @transform_4, window_bounds = array<i64: 1, 128>}, {transform_indices = @transform_5, window_bounds = array<i64: 8, 128>}]} {
    %c0 = arith.constant 0 : index
    %c0_0 = arith.constant 0 : index
    %0 = vector.load %arg1[%c0, %c0_0] : memref<8x16xf32, #tpu.memory_space<vmem>>, vector<8x16xf32>
    %c0_1 = arith.constant 0 : index
    %c0_2 = arith.constant 0 : index
    %1 = vector.load %arg2[%c0_1, %c0_2] : memref<16x128xf32, #tpu.memory_space<vmem>>, vector<16x128xf32>
    %cst = arith.constant dense<0.000000e+00> : vector<8x128xf32>
    %2 = tpu.matmul %0, %1, %cst {dimension_numbers = #tpu.dot_dimension_numbers<[1], [0], [0], [1], [0, 0, 1, 1], [], []>} : vector<8x16xf32>, vector<16x128xf32>, vector<8x128xf32> -> vector<8x128xf32>
    %c0_3 = arith.constant 0 : index
    %c0_4 = arith.constant 0 : index
    %3 = vector.load %arg3[%c0_3, %c0_4] : memref<1x128xf32, #tpu.memory_space<vmem>>, vector<1x128xf32>
    %4 = vector.broadcast %3 : vector<1x128xf32> to vector<8x128xf32>
    %5 = arith.addf %2, %4 : vector<8x128xf32>
    %6 = math.cos %5 : vector<8x128xf32>
    %c0_5 = arith.constant 0 : index
    %c0_6 = arith.constant 0 : index
    %7 = vector.load %arg4[%c0_5, %c0_6] : memref<128x128xf32, #tpu.memory_space<vmem>>, vector<128x128xf32>
    %cst_7 = arith.constant dense<0.000000e+00> : vector<8x128xf32>
    %8 = tpu.matmul %6, %7, %cst_7 {dimension_numbers = #tpu.dot_dimension_numbers<[1], [0], [0], [1], [0, 0, 1, 1], [], []>} : vector<8x128xf32>, vector<128x128xf32>, vector<8x128xf32> -> vector<8x128xf32>
    %c0_8 = arith.constant 0 : index
    %c0_9 = arith.constant 0 : index
    %9 = vector.load %arg5[%c0_8, %c0_9] : memref<1x128xf32, #tpu.memory_space<vmem>>, vector<1x128xf32>
    %10 = vector.broadcast %9 : vector<1x128xf32> to vector<8x128xf32>
    %11 = arith.addf %8, %10 : vector<8x128xf32>
    %c0_10 = arith.constant 0 : index
    %c0_11 = arith.constant 0 : index
    %12 = vector.load %arg6[%c0_10, %c0_11] : memref<8x128xf32, #tpu.memory_space<vmem>>, vector<8x128xf32>
    tpu.vector_store %arg6[%c0_10, %c0_11], %11 {strides = array<i32>} : memref<8x128xf32, #tpu.memory_space<vmem>>, vector<8x128xf32>,
    return
  }
  func.func @transform_0(%arg0: i32) -> (i32, i32) {
    %c0_i32 = arith.constant 0 : i32
    %c0_i32_0 = arith.constant 0 : i32
    return %arg0, %c0_i32 : i32, i32
  }
  func.func @transform_1(%arg0: i32) -> (i32, i32) {
    %c0_i32 = arith.constant 0 : i32
    %c0_i32_0 = arith.constant 0 : i32
    %c0_i32_1 = arith.constant 0 : i32
    return %c0_i32, %c0_i32_0 : i32, i32
  }
  func.func @transform_2(%arg0: i32) -> (i32, i32) {
    %c0_i32 = arith.constant 0 : i32
    %c0_i32_0 = arith.constant 0 : i32
    %c0_i32_1 = arith.constant 0 : i32
    return %c0_i32, %c0_i32_0 : i32, i32
  }
  func.func @transform_3(%arg0: i32) -> (i32, i32) {
    %c0_i32 = arith.constant 0 : i32
    %c0_i32_0 = arith.constant 0 : i32
    %c0_i32_1 = arith.constant 0 : i32
    return %c0_i32, %c0_i32_0 : i32, i32
  }
  func.func @transform_4(%arg0: i32) -> (i32, i32) {
    %c0_i32 = arith.constant 0 : i32
    %c0_i32_0 = arith.constant 0 : i32
    %c0_i32_1 = arith.constant 0 : i32
    return %c0_i32, %c0_i32_0 : i32, i32
  }
  func.func @transform_5(%arg0: i32) -> (i32, i32) {
    %c0_i32 = arith.constant 0 : i32
    %c0_i32_0 = arith.constant 0 : i32
    return %arg0, %c0_i32 : i32, i32
  }
}

</mosaic_0001>

<llo_original>
// kernel: tpu_custom_call.1
$region0: #{tpu_custom_call.1}
  #allocation0 [shape = 'u32[]', space=smem, size = 0x4, offset = 0x4, fixed_abs, tag = 'smem constant byte address 0x4 - core index']
  #allocation1 [shape = 'u32[144,128]{1,0:T(1,128)}', space=vmem, size = 0x12000, scoped, tag = 'internal scratch']
  %s0 = inlined_call_operand.hbm [shape: f32[8,16], index: 0, kind: input, shape index: {}]
  %s1 = inlined_call_operand.hbm [shape: f32[16,128], index: 1, kind: input, shape index: {}]
  %s2 = inlined_call_operand.vmem [shape: f32[1,128], index: 2, kind: input, shape index: {}]
  %s3 = inlined_call_operand.hbm [shape: f32[128,128], index: 3, kind: input, shape index: {}]
  %s4 = inlined_call_operand.vmem [shape: f32[1,128], index: 4, kind: input, shape index: {}]
  %s5 = inlined_call_operand.hbm [shape: f32[8,128], index: 5, kind: output, shape index: {}]
  %s6 = sld [smem:[#allocation0]]
  $region42: #{tpu_custom_call.1} parent=0
    _
  %s8 = ssub.s32 1, %s6
  %s9 = scalar_select 0, %s8, %s6
  $region1: #{tpu_custom_call.1} parent=0
    #allocation2 [shape = 'u8[4096]{0}', space=vmem, size = 0x1000, scoped, tag = 'input window, operand 0, single buffered']
    #allocation3 [shape = 's32[1]{0}', space=sflag, size = 0x4, scoped, tag = 'scoped memory for tpu_custom_call.1']
    #allocation4 [shape = 's32[1]{0}', space=sflag, size = 0x4, scoped, tag = 'scoped memory for tpu_custom_call.1']
    #allocation5 [shape = 'u8[8192]{0}', space=vmem, size = 0x2000, scoped, tag = 'input window, operand 1, single buffered']
    #allocation6 [shape = 's32[1]{0}', space=sflag, size = 0x4, scoped, tag = 'scoped memory for tpu_custom_call.1']
    #allocation7 [shape = 'u8[65536]{0}', space=vmem, size = 0x10000, scoped, tag = 'input window, operand 3, single buffered']
    #allocation8 [shape = 'u8[4096]{0}', space=vmem, size = 0x1000, scoped, tag = 'output window, operand 0, single buffered']
    %10 = vsyncpa [#allocation3], 0
    %11 = vsyncpa [#allocation6], 0
    %12 = vsyncpa [#allocation4], 0
    // Predicated region
    $region2: #{tpu_custom_call.1} parent=1 // pred_check
      _
    $region3: #{tpu_custom_call.1} parent=1 // pred_check_branch
      %14 = sbr.rel (0) target = $region5
    $region4: #{tpu_custom_call.1} parent=1 // pred_region
      %s16 = ssub.s32 128, 128
      %17 = vsyncadd [#allocation3], %s16
      %s19 = sshll.u32 [#allocation2], 4
      %s20 = int_to_ptr.vmem [resolvable:$true] %s19
      %22 = dma.hbm_to_vmem [thread:$0]  %s0, 128, %s20, [#allocation3]
    $region5: #{tpu_custom_call.1} parent=1 // pred_fallthru
      _
    // Predicated region
    $region6: #{tpu_custom_call.1} parent=1 // pred_check
      _
    $region7: #{tpu_custom_call.1} parent=1 // pred_check_branch
      %24 = sbr.rel (0) target = $region9
    $region8: #{tpu_custom_call.1} parent=1 // pred_region
      %s26 = ssub.s32 256, 256
      %27 = vsyncadd [#allocation6], %s26
      %s28 = sshll.u32 [#allocation5], 4
      %s29 = int_to_ptr.vmem [resolvable:$true] %s28
      %34 = dma.hbm_to_vmem [thread:$0]  %s1, 256, %s29, [#allocation6], 128, 128, 8
    $region9: #{tpu_custom_call.1} parent=1 // pred_fallthru
      _
    // Predicated region
    $region10: #{tpu_custom_call.1} parent=1 // pred_check
      _
    $region11: #{tpu_custom_call.1} parent=1 // pred_check_branch
      %36 = sbr.rel (0) target = $region13
    $region12: #{tpu_custom_call.1} parent=1 // pred_region
      _
    $region13: #{tpu_custom_call.1} parent=1 // pred_fallthru
      _
    // Predicated region
    $region14: #{tpu_custom_call.1} parent=1 // pred_check
      _
    $region15: #{tpu_custom_call.1} parent=1 // pred_check_branch
      %38 = sbr.rel (0) target = $region17
    $region16: #{tpu_custom_call.1} parent=1 // pred_region
      %s40 = ssub.s32 2048, 2048
      %41 = vsyncadd [#allocation6], %s40
      %s42 = sshll.u32 [#allocation7], 4
      %s43 = int_to_ptr.vmem [resolvable:$true] %s42
      %48 = dma.hbm_to_vmem [thread:$0]  %s3, 2048, %s43, [#allocation6], 128, 128, 8
    $region17: #{tpu_custom_call.1} parent=1 // pred_fallthru
      _
    // Predicated region
    $region18: #{tpu_custom_call.1} parent=1 // pred_check
      _
    $region19: #{tpu_custom_call.1} parent=1 // pred_check_branch
      %50 = sbr.rel (0) target = $region21
    $region20: #{tpu_custom_call.1} parent=1 // pred_region
      _
    $region21: #{tpu_custom_call.1} parent=1 // pred_fallthru
      _
    // Predicated region
    $region22: #{tpu_custom_call.1} parent=1 // pred_check
      _
    $region23: #{tpu_custom_call.1} parent=1 // pred_check_branch
      %52 = sbr.rel (0) target = $region25
    $region24: #{tpu_custom_call.1} parent=1 // pred_region
      %53 = dma.done [#allocation3], 128
    $region25: #{tpu_custom_call.1} parent=1 // pred_fallthru
      _
    // Predicated region
    $region26: #{tpu_custom_call.1} parent=1 // pred_check
      _
    $region27: #{tpu_custom_call.1} parent=1 // pred_check_branch
      %55 = sbr.rel (0) target = $region29
    $region28: #{tpu_custom_call.1} parent=1 // pred_region
      %56 = dma.done [#allocation6], 256
    $region29: #{tpu_custom_call.1} parent=1 // pred_fallthru
      _
    // Predicated region
    $region30: #{tpu_custom_call.1} parent=1 // pred_check
      _
    $region31: #{tpu_custom_call.1} parent=1 // pred_check_branch
      %58 = sbr.rel (0) target = $region33
    $region32: #{tpu_custom_call.1} parent=1 // pred_region
      %59 = dma.done [#allocation6], 2048
    $region33: #{tpu_custom_call.1} parent=1 // pred_fallthru
      _
    %v60 = vld [vmem:[#allocation2] sm:$0xff]
    %v61 = vld [vmem:[#allocation5] sm:$0xff]
    %v62 = vld [vmem:[#allocation5 + $0x8] sm:$0xff]
    %v63 = vld [vmem:[%s2] sm:$0x1]
    %v65 = vlaneseq
    %v66 = vshrl.u32 %v65, 7
    %v67 = vsub.s32 0, %v66
    %v68 = vrot.slane %v63, %v67
    %vm70 = vcmask 130048
    %v72 = vsel %vm70, %v60, 0
    %74 = vmatprep.subr.mxu0 0.0
    %75 = vmatpush1.msra.mxu0 %v61
    %76 = vmatprep.subr.mxu0 0.0
    %77 = vmatpush1.msra.mxu0 %v62
    %78 = vmatprep.subr.mxu0 0.0
    %79 = vmatpush1.msra.mxu0 0.0
    %80 = vmatprep.subr.mxu0 0.0
    %81 = vmatpush1.msra.mxu0 0.0
    %82 = vmatprep.subr.mxu0 0.0
    %83 = vmatpush1.msra.mxu0 0.0
    %84 = vmatprep.subr.mxu0 0.0
    %85 = vmatpush1.msra.mxu0 0.0
    %86 = vmatprep.subr.mxu0 0.0
    %87 = vmatpush1.msra.mxu0 0.0
    %88 = vmatprep.subr.mxu0 0.0
    %89 = vmatpush1.msra.mxu0 0.0
    %90 = vmatprep.subr.mxu0 0.0
    %91 = vmatpush1.msra.mxu0 0.0
    %92 = vmatprep.subr.mxu0 0.0
    %93 = vmatpush1.msra.mxu0 0.0
    %94 = vmatprep.subr.mxu0 0.0
    %95 = vmatpush1.msra.mxu0 0.0
    %96 = vmatprep.subr.mxu0 0.0
    %97 = vmatpush1.msra.mxu0 0.0
    %98 = vmatprep.subr.mxu0 0.0
    %99 = vmatpush1.msra.mxu0 0.0
    %100 = vmatprep.subr.mxu0 0.0
    %101 = vmatpush1.msra.mxu0 0.0
    %102 = vmatprep.subr.mxu0 0.0
    %103 = vmatpush1.msra.mxu0 0.0
    %104 = vmatprep.subr.mxu0 0.0
    %105 = vmatpush1.msra.mxu0 0.0
    %106 = vmatprep.subr.mxu0 0.0
    %107 = vmatpush1.msra.mxu0 0.0
    %108 = vmatprep.subr.mxu0 0.0
    %109 = vmatpush1.msra.mxu0 0.0
    %110 = vmatprep.subr.mxu0 0.0
    %111 = vmatpush1.msra.mxu0 0.0
    %112 = vmatprep.subr.mxu0 0.0
    %113 = vmatpush1.msra.mxu0 0.0
    %114 = vmatprep.subr.mxu0 0.0
    %115 = vmatpush1.msra.mxu0 0.0
    %116 = vmatprep.subr.mxu0 0.0
    %117 = vmatpush1.msra.mxu0 0.0
    %118 = vmatprep.subr.mxu0 0.0
    %119 = vmatpush1.msra.mxu0 0.0
    %120 = vmatprep.subr.mxu0 0.0
    %121 = vmatpush1.msra.mxu0 0.0
    %122 = vmatprep.subr.mxu0 0.0
    %123 = vmatpush1.msra.mxu0 0.0
    %124 = vmatprep.subr.mxu0 0.0
    %125 = vmatpush1.msra.mxu0 0.0
    %126 = vmatprep.subr.mxu0 0.0
    %127 = vmatpush1.msra.mxu0 0.0
    %128 = vmatprep.subr.mxu0 0.0
    %129 = vmatpush1.msra.mxu0 0.0
    %130 = vmatprep.subr.mxu0 0.0
    %131 = vmatpush1.msra.mxu0 0.0
    %132 = vmatprep.subr.mxu0 0.0
    %133 = vmatpush1.msra.mxu0 0.0
    %134 = vmatprep.subr.mxu0 0.0
    %135 = vmatpush1.msra.mxu0 0.0
    %136 = vmatprep.subr.mxu0 0.0
    %137 = vmatpush1.msra.mxu0 0.0
    %138 = vmatprep.mubr.f32.mxu0 0.0
    %139 = vmatmul.mubr.f32.gmra.mrb[0].mxu0 %v72
    %v140 = vpop.f32.mrb[0].mxu0
    %v141 = vadd.f32 %v68, %v140
    %v142 = vpop.f32.mrb[0].mxu0
    %143 = vdwg.mxu0
    %v144 = vand.u32 2147483647, %v141
    %vm145 = vcmp.le.f32.partialorder %v144, 0.7853982
    %vm146 = vcmp.lt.s32.totalorder %v141, 0
    %v147 = vand.u32 %v141, 2139095040
    %v148 = vshrl.u32 %v147, 23
    %v149 = vsub.s32 %v148, 127
    %v150 = vand.u32 2147483647, %v141
    %v151 = vand.u32 %v150, 8388607
    %v152 = vor.u32 %v151, 8388608
    %v153 = vsub.s32 0, %v152
    %v154 = vadd.s32 %v149, 1
    %vm155 = vcmp.gt.s32.totalorder %v154, 0
    %v156 = vsel %vm155, %v154, 0
    %v157 = vshrl.u32 %v156, 5
    %v158 = vand.u32 %v156, 31
    %v159 = vsub.s32 32, %v158
    %v160 = vshrl.u32 683565275, %v159
    %v161 = vshll.u32 683565275, %v158
    %v162 = vshrl.u32 2475754826, %v159
    %v163 = vor.u32 %v161, %v162
    %v164 = vshll.u32 2475754826, %v158
    %v165 = vshrl.u32 2131351028, %v159
    %v166 = vor.u32 %v164, %v165
    %v167 = vshll.u32 2131351028, %v158
    %v168 = vshrl.u32 2102212464, %v159
    %v169 = vor.u32 %v167, %v168
    %v170 = vshll.u32 2102212464, %v158
    %v171 = vshrl.u32 920167782, %v159
    %v172 = vor.u32 %v170, %v171
    %v173 = vshll.u32 920167782, %v158
    %v174 = vshrl.u32 1326507024, %v159
    %v175 = vor.u32 %v173, %v174
    %vm176 = vcmp.lt.s32.totalorder %v157, 1
    %vm177 = vcmp.lt.s32.totalorder %v157, 2
    %vm178 = vcmp.lt.s32.totalorder %v157, 3
    %vm179 = vcmp.lt.s32.totalorder %v157, 4
    %v180 = vsel %vm176, %v160, %v163
    %v181 = vsel %vm179, %v169, 2102212464
    %v182 = vsel %vm178, %v166, %v181
    %v183 = vsel %vm177, %v180, %v182
    %v184 = vsel %vm176, %v163, %v166
    %v185 = vsel %vm179, %v172, 920167782
    %v186 = vsel %vm178, %v169, %v185
    %v187 = vsel %vm177, %v184, %v186
    %v188 = vsel %vm176, %v166, %v169
    %v189 = vsel %vm179, %v175, 1326507024
    %v190 = vsel %vm178, %v172, %v189
    %v191 = vsel %vm177, %v188, %v190
    %v192 = vshll.u32 %v152, 8
    %v193 = vmul.u32.u64.compose %v192, %v191
    %v194 = vextract.low.u32 %v193
    %v195 = vextract.high.u32 %v193
    %v196 = vmul.u32.u64.compose %v192, %v187
    %v197 = vextract.low.u32 %v196
    %v198 = vextract.high.u32 %v196
    %v199 = vmul.u32 %v192, %v183
    %v200 = vadd.s32 %v195, %v197
    %vm201 = vc.u32 %v195, %v197
    %v202 = vadd.s32 %v198, 1
    %v203 = vsel %vm201, %v202, %v198
    %v204 = vadd.s32 %v199, %v203
    %v205 = vadd.s32 %v204, 536870912
    %v206 = vshrl.u32 %v205, 30
    %v207 = vshll.u32 %v206, 30
    %v208 = vsub.s32 %v204, %v207
    %vm209 = vcmp.lt.s32.totalorder %v208, 0
    %v210 = vsub.s32 0, %v208
    %v211 = vsel %vm209, %v210, %v208
    %v212 = vclz %v211
    %v213 = vsub.s32 %v212, 2
    %vm214 = vcmp.gt.s32.totalorder 0, %v213
    %v215 = vsel %vm214, 0, %v213
    %v216 = vsub.s32 32, %v215
    %v217 = vshll.u32 %v208, %v215
    %v218 = vshrl.u32 %v200, %v216
    %v219 = vor.u32 %v217, %v218
    %v220 = vsub.s32 4294967266, %v215
    %v221 = vadd.s32 %v220, 127
    %v222 = vshll.u32 %v221, 23
    %v223 = vor.u32 4788187, %v222
    %v224 = vand.u32 2147483647, %v223
    %v226 = vcvt.s32.f32 %v219
    %v227 = vmul.f32 %v226, %v224
    %v228 = vxor.u32 %v227, 2147483648
    %v229 = vsel %vm146, %v228, %v227
    %v230 = vsub.s32 4, %v206
    %v231 = vsel %vm146, %v230, %v206
    %v232 = vsel %vm145, %v141, %v229
    %v233 = vsel %vm145, 0, %v231
    %v234 = vcosq.f32.pop %v232
    %v235 = vsinq.f32.pop %v232
    %vm236 = vweird.f32 %v141
    %v237 = vand.u32 %v233, 3
    %vm238 = vcmp.lt.s32.totalorder %v237, 2
    %vm239 = vcmp.eq.s32.totalorder %v237, 0
    %v240 = vxor.u32 %v235, 2147483648
    %v241 = vsel %vm239, %v234, %v240
    %vm242 = vcmp.eq.s32.totalorder %v237, 2
    %v243 = vxor.u32 %v234, 2147483648
    %v244 = vsel %vm242, %v243, %v235
    %v245 = vsel %vm238, %v241, %v244
    %v246 = vsel %vm236, nan, %v245
    %v247 = vld [vmem:[#allocation7] sm:$0xff]
    %v248 = vld [vmem:[#allocation7 + $0x8] sm:$0xff]
    %v249 = vld [vmem:[#allocation7 + $0x10] sm:$0xff]
    %v250 = vld [vmem:[#allocation7 + $0x18] sm:$0xff]
    %v251 = vld [vmem:[#allocation7 + $0x20] sm:$0xff]
    %v252 = vld [vmem:[#allocation7 + $0x28] sm:$0xff]
    %v253 = vld [vmem:[#allocation7 + $0x30] sm:$0xff]
    %v254 = vld [vmem:[#allocation7 + $0x38] sm:$0xff]
    %v255 = vld [vmem:[#allocation7 + $0x40] sm:$0xff]
    %v256 = vld [vmem:[#allocation7 + $0x48] sm:$0xff]
    %v257 = vld [vmem:[#allocation7 + $0x50] sm:$0xff]
    %v258 = vld [vmem:[#allocation7 + $0x58] sm:$0xff]
    %v259 = vld [vmem:[#allocation7 + $0x60] sm:$0xff]
    %v260 = vld [vmem:[#allocation7 + $0x68] sm:$0xff]
    %v261 = vld [vmem:[#allocation7 + $0x70] sm:$0xff]
    %v262 = vld [vmem:[#allocation7 + $0x78] sm:$0xff]
    %v263 = vld [vmem:[%s4] sm:$0x1]
    %v265 = vlaneseq
    %v266 = vshrl.u32 %v265, 7
    %v267 = vsub.s32 0, %v266
    %v268 = vrot.slane %v263, %v267
    %270 = vmatprep.subr.mxu0 0.0
    %271 = vmatpush1.msra.mxu0 %v247
    %272 = vmatprep.subr.mxu0 0.0
    %273 = vmatpush1.msra.mxu0 %v248
    %274 = vmatprep.subr.mxu0 0.0
    %275 = vmatpush1.msra.mxu0 %v249
    %276 = vmatprep.subr.mxu0 0.0
    %277 = vmatpush1.msra.mxu0 %v250
    %278 = vmatprep.subr.mxu0 0.0
    %279 = vmatpush1.msra.mxu0 %v251
    %280 = vmatprep.subr.mxu0 0.0
    %281 = vmatpush1.msra.mxu0 %v252
    %282 = vmatprep.subr.mxu0 0.0
    %283 = vmatpush1.msra.mxu0 %v253
    %284 = vmatprep.subr.mxu0 0.0
    %285 = vmatpush1.msra.mxu0 %v254
    %286 = vmatprep.subr.mxu0 0.0
    %287 = vmatpush1.msra.mxu0 %v255
    %288 = vmatprep.subr.mxu0 0.0
    %289 = vmatpush1.msra.mxu0 %v256
    %290 = vmatprep.subr.mxu0 0.0
    %291 = vmatpush1.msra.mxu0 %v257
    %292 = vmatprep.subr.mxu0 0.0
    %293 = vmatpush1.msra.mxu0 %v258
    %294 = vmatprep.subr.mxu0 0.0
    %295 = vmatpush1.msra.mxu0 %v259
    %296 = vmatprep.subr.mxu0 0.0
    %297 = vmatpush1.msra.mxu0 %v260
    %298 = vmatprep.subr.mxu0 0.0
    %299 = vmatpush1.msra.mxu0 %v261
    %300 = vmatprep.subr.mxu0 0.0
    %301 = vmatpush1.msra.mxu0 %v262
    %302 = vmatprep.subr.mxu0 0.0
    %303 = vmatpush1.msra.mxu0 0.0
    %304 = vmatprep.subr.mxu0 0.0
    %305 = vmatpush1.msra.mxu0 0.0
    %306 = vmatprep.subr.mxu0 0.0
    %307 = vmatpush1.msra.mxu0 0.0
    %308 = vmatprep.subr.mxu0 0.0
    %309 = vmatpush1.msra.mxu0 0.0
    %310 = vmatprep.subr.mxu0 0.0
    %311 = vmatpush1.msra.mxu0 0.0
    %312 = vmatprep.subr.mxu0 0.0
    %313 = vmatpush1.msra.mxu0 0.0
    %314 = vmatprep.subr.mxu0 0.0
    %315 = vmatpush1.msra.mxu0 0.0
    %316 = vmatprep.subr.mxu0 0.0
    %317 = vmatpush1.msra.mxu0 0.0
    %318 = vmatprep.subr.mxu0 0.0
    %319 = vmatpush1.msra.mxu0 0.0
    %320 = vmatprep.subr.mxu0 0.0
    %321 = vmatpush1.msra.mxu0 0.0
    %322 = vmatprep.subr.mxu0 0.0
    %323 = vmatpush1.msra.mxu0 0.0
    %324 = vmatprep.subr.mxu0 0.0
    %325 = vmatpush1.msra.mxu0 0.0
    %326 = vmatprep.subr.mxu0 0.0
    %327 = vmatpush1.msra.mxu0 0.0
    %328 = vmatprep.subr.mxu0 0.0
    %329 = vmatpush1.msra.mxu0 0.0
    %330 = vmatprep.subr.mxu0 0.0
    %331 = vmatpush1.msra.mxu0 0.0
    %332 = vmatprep.subr.mxu0 0.0
    %333 = vmatpush1.msra.mxu0 0.0
    %334 = vmatprep.mubr.f32.mxu0 0.0
    %335 = vmatmul.mubr.f32.gmra.mrb[0].mxu0 %v246
    %v336 = vpop.f32.mrb[0].mxu0
    %v337 = vadd.f32 %v268, %v336
    %v338 = vpop.f32.mrb[0].mxu0
    %339 = vdwg.mxu0
    %340 = vst [vmem:[#allocation8] sm:$0xff] %v337
    // Predicated region
    $region34: #{tpu_custom_call.1} parent=1 // pred_check
      _
    $region35: #{tpu_custom_call.1} parent=1 // pred_check_branch
      %342 = sbr.rel (0) target = $region37
    $region36: #{tpu_custom_call.1} parent=1 // pred_region
      %s344 = ssub.s32 128, 128
      %345 = vsyncadd [#allocation4], %s344
      %s347 = sshll.u32 [#allocation8], 4
      %s348 = int_to_ptr.vmem [resolvable:$true] %s347
      %350 = dma.vmem_to_hbm [thread:$0]  %s348, 128, %s5, [#allocation4]
    $region37: #{tpu_custom_call.1} parent=1 // pred_fallthru
      _
    // Predicated region
    $region38: #{tpu_custom_call.1} parent=1 // pred_check
      _
    $region39: #{tpu_custom_call.1} parent=1 // pred_check_branch
      %352 = sbr.rel (0) target = $region41
    $region40: #{tpu_custom_call.1} parent=1 // pred_region
      %353 = dma.done [#allocation4], 128
    $region41: #{tpu_custom_call.1} parent=1 // pred_fallthru
      _
    %354 = vsyncpa [#allocation3], 1
    %355 = vsyncpa [#allocation6], 1
    %356 = vsyncpa [#allocation4], 1

</llo_original>
